<compile_context>
chip_gen: v7x
topology: tpu7x:2x2x1
jax: 0.10.0
libtpu: 0.0.40
codegen_flags: <defaults>
</compile_context>

<pallas_src>
from math import prod

import jax
import jax.numpy as jnp
from jax.experimental import pallas as pl
from jax.experimental.pallas import tpu as pltpu


def _round_up(x, m):
    return ((x + m - 1) // m) * m


def _vmem_budget_bytes():
    """Per-generation VMEM budget for resident weight + pipeline buffers.

    ~28 MiB on v5e/v6e (128 MiB physical VMEM), ~21 MiB on v7x (64 MiB per TC;
    each TensorCore holds its own copy of the resident weight when the batch
    grid is sharded across the two cores).
    """
    try:
        cap = pltpu.get_tpu_info().vmem_capacity_bytes
    except Exception:
        cap = 64 * 1024 * 1024
    return min(28 * 1024 * 1024, cap // 3)


def _spec(shape, idx_map, bufs=None):
    if bufs is None:
        return pl.BlockSpec(shape, idx_map)
    return pl.BlockSpec(shape, idx_map, pipeline_mode=pl.Buffered(bufs))


def _pick_tile(dim_pad, preferred):
    """Largest multiple of 128 <= preferred that divides dim_pad (dim_pad is a
    multiple of 128 by construction)."""
    t = max(128, (min(preferred, dim_pad) // 128) * 128)
    while dim_pad % t != 0:
        t -= 128
    return t


def _choose_batch_tile(B, bytes_per_row, fixed_bytes, budget_bytes, max_tb=1024):
    """Pick a multiple-of-16 batch tile that fits the VMEM budget, minimizes
    batch-padding waste, and gives >=2 grid steps when the batch allows (so
    v7x's two TensorCores both get work)."""
    b16 = _round_up(max(B, 1), 16)
    avail = max(budget_bytes - fixed_bytes, 16 * bytes_per_row)
    cap = max(16, (avail // bytes_per_row) // 16 * 16)
    cap = min(cap, max_tb, b16)
    if b16 >= 32:                                   # ensure >=2 grid steps
        cap = min(cap, _round_up(-(-b16 // 2), 16))
    best_tb, best_waste = 16, None
    tb = 16
    while tb <= cap:
        waste = tb * (-(-b16 // tb)) - b16
        if best_waste is None or waste < best_waste or (
                waste == best_waste and tb > best_tb):
            best_tb, best_waste = tb, waste
        tb += 16
    return best_tb


# --------------------------------------------------------------------------
# Kernels
# --------------------------------------------------------------------------
def _linear_sigmoid_resident_kernel(x_ref, w_ref, b_ref, o_ref):
    # x_ref: (TB, K)  f32  batch tile (cast to bf16 here, right before the MXU)
    # w_ref: (K, Np)  bf16 VMEM-resident, single-buffered across the grid
    # b_ref: (1, Np)  f32  VMEM-resident
    # o_ref: (TB, Np) f32  lane-dense (Np % 128 == 0)
    xb = x_ref[...].astype(jnp.bfloat16)
    z = jnp.dot(xb, w_ref[...], preferred_element_type=jnp.float32)
    z = z + b_ref[...]                                # broadcast over rows
    # Exact sigmoid via tanh -> EUP slot (free w.r.t. MXU / store path).
    o_ref[...] = (0.5 * (jnp.tanh(0.5 * z) + 1.0)).astype(o_ref.dtype)


def _linear_sigmoid_tiled_kernel(x_ref, w_ref, b_ref, o_ref, acc_ref):
    # Fallback for weights too large to stay resident: grid=(nb, nn, nk),
    # K axis last ("arbitrary"), f32 accumulator scratch, finalize on last K.
    k = pl.program_id(2)

    @pl.when(k == 0)
    def _():
        acc_ref[...] = jnp.zeros_like(acc_ref)

    xb = x_ref[...].astype(jnp.bfloat16)
    acc_ref[...] += jnp.dot(xb, w_ref[...], preferred_element_type=jnp.float32)

    @pl.when(k == pl.num_programs(2) - 1)
    def _():
        z = acc_ref[...] + b_ref[...]
        o_ref[...] = (0.5 * (jnp.tanh(0.5 * z) + 1.0)).astype(o_ref.dtype)


# --------------------------------------------------------------------------
# Wrapper
# --------------------------------------------------------------------------
def relaxed_bernoulli_probs(x, w_padded, b_padded, out_features, *,
                            tiled=False, budget_bytes=None):
    """sigmoid(x @ W + b) with a Pallas TPU kernel.

    x:        (B, in_dim)   float (cast to bf16 in-kernel just before the MXU)
    w_padded: (k_pad, n_pad) bf16 cached padded weight, n_pad % 128 == 0
    b_padded: (1, n_pad)     float32 cached padded bias
    returns   (B, out_features) float32
    """
    B, in_dim = x.shape
    k_pad, n_pad = w_padded.shape
    if budget_bytes is None:
        budget_bytes = _vmem_budget_bytes()
    x_item = jnp.dtype(x.dtype).itemsize
    vmem_limit = min(budget_bytes + (8 << 20), 100 << 20)

    if not tiled:
        # ----- resident-weight path (weight + bias live in VMEM all grid long)
        fixed = k_pad * n_pad * 2 + n_pad * 4                 # single-buffered
        per_row = 3 * (in_dim * x_item + n_pad * 4)           # x/out, <=3 bufs
        tb = _choose_batch_tile(B, per_row, fixed, budget_bytes)
        b_pad = _round_up(B, tb)
        x_p = x if b_pad == B else jnp.pad(x, ((0, b_pad - B), (0, 0)))
        nsteps = b_pad // tb
        deep = 3 if nsteps >= 4 else None                     # hide DMA latency
        cost = pl.CostEstimate(
            flops=2 * B * in_dim * out_features,
            transcendentals=B * out_features,
            bytes_accessed=(b_pad * in_dim * x_item + k_pad * n_pad * 2
                            + n_pad * 4 + b_pad * n_pad * 4))
        out = pl.pallas_call(
            _linear_sigmoid_resident_kernel,
            out_shape=jax.ShapeDtypeStruct((b_pad, n_pad), jnp.float32),
            grid=(nsteps,),
            in_specs=[
                _spec((tb, in_dim), lambda i: (i, 0), deep),   # batch-tiled x
                _spec((in_dim, n_pad), lambda i: (0, 0), 1),   # resident weight
                _spec((1, n_pad), lambda i: (0, 0), 1),        # resident bias
            ],
            out_specs=_spec((tb, n_pad), lambda i: (i, 0), deep),
            compiler_params=pltpu.CompilerParams(
                dimension_semantics=("parallel",),             # shard across TCs
                vmem_limit_bytes=vmem_limit),
            cost_estimate=cost,
        )(x_p, w_padded, b_padded)
    else:
        # ----- K/N-tiled fallback (weight too large to sit resident in VMEM)
        tk = _pick_tile(k_pad, 512)
        tn = _pick_tile(n_pad, 256)
        fixed = 2 * tk * tn * 2 + 2 * tn * 4                  # dbl-buffered W + b
        per_row = 2 * (tk * x_item + tn * 4) + tn * 4         # x, out, acc
        tb = _choose_batch_tile(B, per_row, fixed, budget_bytes, max_tb=512)
        b_pad = _round_up(B, tb)
        if b_pad == B and k_pad == in_dim:
            x_p = x
        else:
            x_p = jnp.pad(x, ((0, b_pad - B), (0, k_pad - in_dim)))
        grid = (b_pad // tb, n_pad // tn, k_pad // tk)
        cost = pl.CostEstimate(
            flops=2 * b_pad * k_pad * n_pad,
            transcendentals=b_pad * n_pad,
            bytes_accessed=(grid[1] * b_pad * k_pad * x_item
                            + grid[0] * k_pad * n_pad * 2
                            + n_pad * 4 + b_pad * n_pad * 4))
        out = pl.pallas_call(
            _linear_sigmoid_tiled_kernel,
            out_shape=jax.ShapeDtypeStruct((b_pad, n_pad), jnp.float32),
            grid=grid,
            in_specs=[
                pl.BlockSpec((tb, tk), lambda i, j, k: (i, k)),
                pl.BlockSpec((tk, tn), lambda i, j, k: (k, j)),
                pl.BlockSpec((1, tn), lambda i, j, k: (0, j)),
            ],
            out_specs=pl.BlockSpec((tb, tn), lambda i, j, k: (i, j)),
            scratch_shapes=[pltpu.VMEM((tb, tn), jnp.float32)],
            compiler_params=pltpu.CompilerParams(
                dimension_semantics=("parallel", "parallel", "arbitrary"),
                vmem_limit_bytes=vmem_limit),
            cost_estimate=cost,
        )(x_p, w_padded, b_padded)

    if b_pad == B and n_pad == out_features:
        return out                   # aligned case: skip the extra HBM pass
    return out[:B, :out_features]


# --------------------------------------------------------------------------
# Module
# --------------------------------------------------------------------------
class RelaxedBernoulliPallas:
    """JAX/Pallas port of the PyTorch RelaxedBernoulli module's forward pass."""

    def __init__(self, in_dim, out_size, temp, key, *, force_tiled=False,
                 prefer_xla_for_tiny=False):
        self.in_dim = in_dim
        self.out_size = tuple(out_size)
        self.temp = temp
        self.out_features = prod(self.out_size)
        self._prefer_xla_for_tiny = prefer_xla_for_tiny

        k_w, k_b = jax.random.split(key)
        # Deterministic init mimicking nn.Linear's uniform(-1/sqrt(in), 1/sqrt(in)).
        bound = 1.0 / (in_dim ** 0.5)
        # PyTorch weight is (out_features, in_dim); store transposed for the kernel.
        w = jax.random.uniform(k_w, (self.out_features, in_dim), jnp.float32,
                               -bound, bound)
        self.w_t = jnp.transpose(w)                     # (in_dim, out_features) f32
        self.b = jax.random.uniform(k_b, (self.out_features,), jnp.float32,
                                    -bound, bound)

        # Decide resident vs. K/N-tiled path once, from the layer shape.
        self._budget = _vmem_budget_bytes()
        n_pad = _round_up(max(self.out_features, 128), 128)
        resident_bytes = in_dim * n_pad * 2 + n_pad * 4
        min_tile = 3 * 16 * (in_dim * 4 + n_pad * 4)
        self._tiled = force_tiled or (resident_bytes + min_tile > self._budget)
        k_pad = in_dim if not self._tiled else _round_up(in_dim, 128)

        # Cache padded bf16 weight + padded f32 bias ONCE (no per-call pad/cast).
        self.w_padded = (jnp.zeros((k_pad, n_pad), jnp.bfloat16)
                         .at[:in_dim, :self.out_features]
                         .set(self.w_t.astype(jnp.bfloat16)))
        self.b_padded = (jnp.zeros((1, n_pad), jnp.float32)
                         .at[0, :self.out_features].set(self.b))

    def __call__(self, x):
        # x: (B, in_dim)
        B = x.shape[0]
        if (self._prefer_xla_for_tiny
                and B * self.in_dim * self.out_features < (1 << 18)):
            # Tiny layers: pad -> pallas_call -> slice costs more than XLA's
            # fused dot+sigmoid. Off by default so the kernel is exercised.
            probs_flat = jax.nn.sigmoid(x @ self.w_t + self.b)
        else:
            probs_flat = relaxed_bernoulli_probs(
                x, self.w_padded, self.b_padded, self.out_features,
                tiled=self._tiled, budget_bytes=self._budget)
        probs = probs_flat.reshape((B,) + self.out_size)      # View(out_size)
        # TODO(synk): torch.distributions.RelaxedBernoulli has no Pallas
        # equivalent; return (temperature, probs), which fully parameterize it.
        return self.temp, probs


if __name__ == "__main__":
    key = jax.random.PRNGKey(0)
    k_x, k_params, k_params2 = jax.random.split(key, 3)

    B, in_dim = 8, 32
    out_size = (4, 16)          # prod = 64
    temp = 0.5
    x = jax.random.normal(k_x, (B, in_dim), dtype=jnp.float32)

    # --- resident-weight path ---
    module = RelaxedBernoulliPallas(in_dim, out_size, temp, k_params)
    temperature, probs = module(x)
    probs = jax.block_until_ready(probs)

    # Reference with the same bf16-cast operands the kernel sees (f32 accumulate).
    x_bf = x.astype(jnp.bfloat16).astype(jnp.float32)
    w_bf = module.w_t.astype(jnp.bfloat16).astype(jnp.float32)
    ref = jax.nn.sigmoid(x_bf @ w_bf + module.b).reshape((B,) + out_size)
    ref_f32 = jax.nn.sigmoid(x @ module.w_t + module.b).reshape((B,) + out_size)

    assert probs.shape == (B,) + out_size
    assert temperature == temp
    assert jnp.allclose(probs, ref, atol=2e-3, rtol=2e-3)
    assert jnp.allclose(probs, ref_f32, atol=2e-2, rtol=2e-2)
    assert bool(jnp.all((probs >= 0.0) & (probs <= 1.0)))

    # --- K/N-tiled fallback path (forced, cheap correctness check) ---
    module_t = RelaxedBernoulliPallas(in_dim, out_size, temp, k_params2,
                                      force_tiled=True)
    _, probs_t = module_t(x)
    probs_t = jax.block_until_ready(probs_t)
    w_bf_t = module_t.w_t.astype(jnp.bfloat16).astype(jnp.float32)
    ref_t = jax.nn.sigmoid(x_bf @ w_bf_t + module_t.b).reshape((B,) + out_size)
    assert probs_t.shape == (B,) + out_size
    assert jnp.allclose(probs_t, ref_t, atol=2e-3, rtol=2e-3)
    assert bool(jnp.all((probs_t >= 0.0) & (probs_t <= 1.0)))

    print("KERNEL_OK")
</pallas_src>

<mosaic_0001>
module attributes {stable_mosaic.version = 11 : i64} {
  func.func @_linear_sigmoid_resident_kernel(%arg0: i32, %arg1: memref<16x32xf32, #tpu.memory_space<vmem>>, %arg2: memref<32x128xbf16, #tpu.memory_space<vmem>>, %arg3: memref<1x128xf32, #tpu.memory_space<vmem>>, %arg4: memref<16x128xf32, #tpu.memory_space<vmem>>) attributes {dimension_semantics = [#tpu.dimension_semantics<parallel>], iteration_bounds = array<i64: 1>, scalar_prefetch = 0 : i64, scratch_operands = 0 : i64, tpu.core_type = #tpu.core_type<tc>, window_params = [{transform_indices = @transform_0, window_bounds = array<i64: 16, 32>}, {pipeline_mode = #tpu.pipeline_mode<synchronous>, transform_indices = @transform_1, window_bounds = array<i64: 32, 128>}, {pipeline_mode = #tpu.pipeline_mode<synchronous>, transform_indices = @transform_2, window_bounds = array<i64: 1, 128>}, {transform_indices = @transform_3, window_bounds = array<i64: 16, 128>}]} {
    %c0 = arith.constant 0 : index
    %c0_0 = arith.constant 0 : index
    %0 = vector.load %arg1[%c0, %c0_0] : memref<16x32xf32, #tpu.memory_space<vmem>>, vector<16x32xf32>
    %1 = arith.truncf %0 : vector<16x32xf32> to vector<16x32xbf16>
    %c0_1 = arith.constant 0 : index
    %c0_2 = arith.constant 0 : index
    %2 = vector.load %arg2[%c0_1, %c0_2] : memref<32x128xbf16, #tpu.memory_space<vmem>>, vector<32x128xbf16>
    %cst = arith.constant dense<0.000000e+00> : vector<16x128xf32>
    %3 = tpu.matmul %1, %2, %cst {dimension_numbers = #tpu.dot_dimension_numbers<[1], [0], [0], [1], [0, 0, 1, 1], [], []>} : vector<16x32xbf16>, vector<32x128xbf16>, vector<16x128xf32> -> vector<16x128xf32>
    %c0_3 = arith.constant 0 : index
    %c0_4 = arith.constant 0 : index
    %4 = vector.load %arg3[%c0_3, %c0_4] : memref<1x128xf32, #tpu.memory_space<vmem>>, vector<1x128xf32>
    %5 = vector.broadcast %4 : vector<1x128xf32> to vector<16x128xf32>
    %6 = arith.addf %3, %5 : vector<16x128xf32>
    %cst_5 = arith.constant 5.000000e-01 : f32
    %7 = vector.broadcast %cst_5 : f32 to vector<16x128xf32>
    %8 = arith.mulf %7, %6 : vector<16x128xf32>
    %9 = math.tanh %8 : vector<16x128xf32>
    %cst_6 = arith.constant 1.000000e+00 : f32
    %10 = vector.broadcast %cst_6 : f32 to vector<16x128xf32>
    %11 = arith.addf %9, %10 : vector<16x128xf32>
    %cst_7 = arith.constant 5.000000e-01 : f32
    %12 = vector.broadcast %cst_7 : f32 to vector<16x128xf32>
    %13 = arith.mulf %12, %11 : vector<16x128xf32>
    %c0_8 = arith.constant 0 : index
    %c0_9 = arith.constant 0 : index
    %14 = vector.load %arg4[%c0_8, %c0_9] : memref<16x128xf32, #tpu.memory_space<vmem>>, vector<16x128xf32>
    tpu.vector_store %arg4[%c0_8, %c0_9], %13 {strides = array<i32>} : memref<16x128xf32, #tpu.memory_space<vmem>>, vector<16x128xf32>,
    return
  }
  func.func @transform_0(%arg0: i32) -> (i32, i32) {
    %c0_i32 = arith.constant 0 : i32
    %c0_i32_0 = arith.constant 0 : i32
    return %arg0, %c0_i32 : i32, i32
  }
  func.func @transform_1(%arg0: i32) -> (i32, i32) {
    %c0_i32 = arith.constant 0 : i32
    %c0_i32_0 = arith.constant 0 : i32
    %c0_i32_1 = arith.constant 0 : i32
    return %c0_i32, %c0_i32_0 : i32, i32
  }
  func.func @transform_2(%arg0: i32) -> (i32, i32) {
    %c0_i32 = arith.constant 0 : i32
    %c0_i32_0 = arith.constant 0 : i32
    %c0_i32_1 = arith.constant 0 : i32
    return %c0_i32, %c0_i32_0 : i32, i32
  }
  func.func @transform_3(%arg0: i32) -> (i32, i32) {
    %c0_i32 = arith.constant 0 : i32
    %c0_i32_0 = arith.constant 0 : i32
    return %arg0, %c0_i32 : i32, i32
  }
}

</mosaic_0001>

<llo_original>
// kernel: tpu_custom_call.1
$region0: #{tpu_custom_call.1}
  #allocation0 [shape = 'u32[]', space=smem, size = 0x4, offset = 0x4, fixed_abs, tag = 'smem constant byte address 0x4 - core index']
  #allocation1 [shape = 'u32[144,128]{1,0:T(1,128)}', space=vmem, size = 0x12000, scoped, tag = 'internal scratch']
  %s0 = inlined_call_operand.hbm [shape: f32[16,32], index: 0, kind: input, shape index: {}]
  %s1 = inlined_call_operand.hbm [shape: bf16[32,128], index: 1, kind: input, shape index: {}]
  %s2 = inlined_call_operand.vmem [shape: f32[1,128], index: 2, kind: input, shape index: {}]
  %s3 = inlined_call_operand.hbm [shape: f32[16,128], index: 3, kind: output, shape index: {}]
  %s4 = sld [smem:[#allocation0]]
  $region30: #{tpu_custom_call.1} parent=0
    _
  %s6 = ssub.s32 1, %s4
  %s7 = scalar_select 0, %s6, %s4
  $region1: #{tpu_custom_call.1} parent=0
    #allocation2 [shape = 'u8[8192]{0}', space=vmem, size = 0x2000, scoped, tag = 'input window, operand 0, single buffered']
    #allocation3 [shape = 's32[1]{0}', space=sflag, size = 0x4, scoped, tag = 'scoped memory for tpu_custom_call.1']
    #allocation4 [shape = 's32[1]{0}', space=sflag, size = 0x4, scoped, tag = 'scoped memory for tpu_custom_call.1']
    #allocation5 [shape = 'u8[8192]{0}', space=vmem, size = 0x2000, scoped, tag = 'input window, operand 1, single buffered']
    #allocation6 [shape = 's32[1]{0}', space=sflag, size = 0x4, scoped, tag = 'scoped memory for tpu_custom_call.1']
    #allocation7 [shape = 'u8[8192]{0}', space=vmem, size = 0x2000, scoped, tag = 'output window, operand 0, single buffered']
    %8 = vsyncpa [#allocation3], 0
    %9 = vsyncpa [#allocation6], 0
    %10 = vsyncpa [#allocation4], 0
    // Predicated region
    $region2: #{tpu_custom_call.1} parent=1 // pred_check
      _
    $region3: #{tpu_custom_call.1} parent=1 // pred_check_branch
      %12 = sbr.rel (0) target = $region5
    $region4: #{tpu_custom_call.1} parent=1 // pred_region
      %s14 = ssub.s32 256, 256
      %15 = vsyncadd [#allocation3], %s14
      %s16 = sshll.u32 [#allocation2], 4
      %s17 = int_to_ptr.vmem [resolvable:$true] %s16
      %22 = dma.hbm_to_vmem [thread:$0]  %s0, 256, %s17, [#allocation3], 128, 128, 8
    $region5: #{tpu_custom_call.1} parent=1 // pred_fallthru
      _
    // Predicated region
    $region6: #{tpu_custom_call.1} parent=1 // pred_check
      _
    $region7: #{tpu_custom_call.1} parent=1 // pred_check_branch
      %24 = sbr.rel (0) target = $region9
    $region8: #{tpu_custom_call.1} parent=1 // pred_region
      %s26 = ssub.s32 256, 256
      %27 = vsyncadd [#allocation6], %s26
      %s28 = sshll.u32 [#allocation5], 4
      %s29 = int_to_ptr.vmem [resolvable:$true] %s28
      %34 = dma.hbm_to_vmem [thread:$0]  %s1, 256, %s29, [#allocation6], 64, 64, 4
    $region9: #{tpu_custom_call.1} parent=1 // pred_fallthru
      _
    // Predicated region
    $region10: #{tpu_custom_call.1} parent=1 // pred_check
      _
    $region11: #{tpu_custom_call.1} parent=1 // pred_check_branch
      %36 = sbr.rel (0) target = $region13
    $region12: #{tpu_custom_call.1} parent=1 // pred_region
      _
    $region13: #{tpu_custom_call.1} parent=1 // pred_fallthru
      _
    // Predicated region
    $region14: #{tpu_custom_call.1} parent=1 // pred_check
      _
    $region15: #{tpu_custom_call.1} parent=1 // pred_check_branch
      %38 = sbr.rel (0) target = $region17
    $region16: #{tpu_custom_call.1} parent=1 // pred_region
      %39 = dma.done [#allocation3], 256
    $region17: #{tpu_custom_call.1} parent=1 // pred_fallthru
      _
    // Predicated region
    $region18: #{tpu_custom_call.1} parent=1 // pred_check
      _
    $region19: #{tpu_custom_call.1} parent=1 // pred_check_branch
      %41 = sbr.rel (0) target = $region21
    $region20: #{tpu_custom_call.1} parent=1 // pred_region
      %42 = dma.done [#allocation6], 256
    $region21: #{tpu_custom_call.1} parent=1 // pred_fallthru
      _
    %v44 = vld [vmem:[#allocation2] sm:$0xff]
    %v45 = vld [vmem:[#allocation2 + $0x8] sm:$0xff]
    %v46 = vpack.c.bf16 %v45, %v44
    %v47 = vld [vmem:[#allocation5] sm:$0xf]
    %v48 = vld [vmem:[#allocation5 + $0x4] sm:$0xf]
    %v49 = vld [vmem:[#allocation5 + $0x8] sm:$0xf]
    %v50 = vld [vmem:[#allocation5 + $0xc] sm:$0xf]
    %v51 = vld [vmem:[%s2] sm:$0x1]
    %v53 = vlaneseq
    %v54 = vshrl.u32 %v53, 7
    %v55 = vsub.s32 0, %v54
    %v56 = vrot.slane %v51, %v55
    %v62 = vunpack.c.l.b16 %v47
    %v63 = vunpack.c.l.b16 %v48
    %v64 = vunpack.c.l.b16 %v49
    %v65 = vunpack.c.l.b16 %v50
    %v66 = vpack.c.b16 %v63, %v62
    %v67 = vpack.c.b16 %v65, %v64
    %vm70 = vcmask 261120
    %v72 = vsel %vm70, %v46, 0
    %74 = vmatprep.subr.bf16.mxu0 0
    %75 = vmatpush1.bf16.msra.mxu0 %v66
    %76 = vmatprep.subr.bf16.mxu0 0
    %77 = vmatpush1.bf16.msra.mxu0 %v67
    %78 = vmatprep.subr.bf16.mxu0 0
    %79 = vmatpush1.bf16.msra.mxu0 0
    %80 = vmatprep.subr.bf16.mxu0 0
    %81 = vmatpush1.bf16.msra.mxu0 0
    %82 = vmatprep.subr.bf16.mxu0 0
    %83 = vmatpush1.bf16.msra.mxu0 0
    %84 = vmatprep.subr.bf16.mxu0 0
    %85 = vmatpush1.bf16.msra.mxu0 0
    %86 = vmatprep.subr.bf16.mxu0 0
    %87 = vmatpush1.bf16.msra.mxu0 0
    %88 = vmatprep.subr.bf16.mxu0 0
    %89 = vmatpush1.bf16.msra.mxu0 0
    %90 = vmatprep.subr.bf16.mxu0 0
    %91 = vmatpush1.bf16.msra.mxu0 0
    %92 = vmatprep.subr.bf16.mxu0 0
    %93 = vmatpush1.bf16.msra.mxu0 0
    %94 = vmatprep.subr.bf16.mxu0 0
    %95 = vmatpush1.bf16.msra.mxu0 0
    %96 = vmatprep.subr.bf16.mxu0 0
    %97 = vmatpush1.bf16.msra.mxu0 0
    %98 = vmatprep.subr.bf16.mxu0 0
    %99 = vmatpush1.bf16.msra.mxu0 0
    %100 = vmatprep.subr.bf16.mxu0 0
    %101 = vmatpush1.bf16.msra.mxu0 0
    %102 = vmatprep.subr.bf16.mxu0 0
    %103 = vmatpush1.bf16.msra.mxu0 0
    %104 = vmatprep.subr.bf16.mxu0 0
    %105 = vmatpush1.bf16.msra.mxu0 0
    %106 = vmatprep.mubr.bf16.mxu0 0
    %107 = vmatmul.mubr.bf16.gmra.mrb[0].mxu0 %v72
    %v108 = vpop.f32.mrb[0].mxu0
    %v109 = vadd.f32 %v56, %v108
    %v110 = vpop.f32.mrb[0].mxu0
    %v111 = vpop.f32.mrb[0].mxu0
    %v112 = vadd.f32 %v56, %v111
    %v113 = vpop.f32.mrb[0].mxu0
    %114 = vdwg.mxu0
    %v115 = vmul.f32 %v109, 0.5
    %v116 = vmul.f32 %v112, 0.5
    %v117 = vtanh.pop %v115
    %v118 = vtanh.pop %v116
    %v119 = vadd.f32 %v117, 1.0
    %v120 = vadd.f32 %v118, 1.0
    %v121 = vmul.f32 %v119, 0.5
    %v122 = vmul.f32 %v120, 0.5
    %123 = vst [vmem:[#allocation7] sm:$0xff] %v121
    %124 = vst [vmem:[#allocation7 + $0x8] sm:$0xff] %v122
    // Predicated region
    $region22: #{tpu_custom_call.1} parent=1 // pred_check
      _
    $region23: #{tpu_custom_call.1} parent=1 // pred_check_branch
      %126 = sbr.rel (0) target = $region25
    $region24: #{tpu_custom_call.1} parent=1 // pred_region
      %s128 = ssub.s32 256, 256
      %129 = vsyncadd [#allocation4], %s128
      %s130 = sshll.u32 [#allocation7], 4
      %s131 = int_to_ptr.vmem [resolvable:$true] %s130
      %136 = dma.vmem_to_hbm [thread:$0]  %s131, 256, %s3, [#allocation4], 128, 128, 8
    $region25: #{tpu_custom_call.1} parent=1 // pred_fallthru
      _
    // Predicated region
    $region26: #{tpu_custom_call.1} parent=1 // pred_check
      _
    $region27: #{tpu_custom_call.1} parent=1 // pred_check_branch
      %138 = sbr.rel (0) target = $region29
    $region28: #{tpu_custom_call.1} parent=1 // pred_region
      %139 = dma.done [#allocation4], 256
    $region29: #{tpu_custom_call.1} parent=1 // pred_fallthru
      _
    %140 = vsyncpa [#allocation3], 1
    %141 = vsyncpa [#allocation6], 1
    %142 = vsyncpa [#allocation4], 1

</llo_original>
